<compile_context>
chip_gen: v6e
topology: v6e:2x2x1
jax: 0.10.0
libtpu: 0.0.40
codegen_flags: <defaults>
</compile_context>

<pallas_src>
import jax
import jax.numpy as jnp
from jax.experimental import pallas as pl
from jax.experimental.pallas import tpu as pltpu

EPS = 1e-5
IN_DIM = 1152
HID = 64


def _mlp_kernel(x_ref, w1_ref, b1_ref, w2_ref, b2_ref, w3_ref, b3_ref, o_ref):
    x = x_ref[...]                                                     # (TN, 1152)

    # layer_1 + ReLU
    h = jnp.dot(x, w1_ref[...], preferred_element_type=jnp.float32)   # (TN, 64)
    h = jnp.maximum(h + b1_ref[...], 0.0)

    # layer_2 (BN1 folded in) + ReLU
    h = jnp.dot(h, w2_ref[...], preferred_element_type=jnp.float32)   # (TN, 64)
    h = jnp.maximum(h + b2_ref[...], 0.0)

    # dropout: identity in eval mode
    # layer_out (BN2 folded in)
    o = jnp.dot(h, w3_ref[...], preferred_element_type=jnp.float32)   # (TN, 1)
    o_ref[...] = (o + b3_ref[...]).astype(o_ref.dtype)


def binary_classification_forward(x, params, *, tile_n=2048):
    """x: (N, 1152) float32 (or bfloat16). Returns (N, 1) float32 logits."""
    N, D = x.shape
    assert D == IN_DIM

    # ---- fold eval-mode BatchNorms into the following Linear layers ----
    s1 = params["bn1_gamma"] * jax.lax.rsqrt(params["bn1_var"] + EPS)   # (1, 64)
    s2 = params["bn2_gamma"] * jax.lax.rsqrt(params["bn2_var"] + EPS)   # (1, 64)

    w2f = params["w2"] * s1.reshape(-1, 1)                              # (64, 64)
    b2f = params["b2"] + (params["bn1_beta"] - params["bn1_mean"] * s1) @ params["w2"]
    w3f = params["w3"] * s2.reshape(-1, 1)                              # (64, 1)
    b3f = params["b3"] + (params["bn2_beta"] - params["bn2_mean"] * s2) @ params["w3"]

    # ---- batch tiling: multiple of 8, <= tile_n, and <= ~ceil(N/2) so the
    # grid has >= 2 tiles (keeps both v7x TensorCores busy). No jnp.pad: the
    # partial last tile is handled natively by Pallas.
    half = -(-N // 2)
    half8 = max(8, ((half + 7) // 8) * 8)
    tn = max(8, min(tile_n, half8))
    grid_n = (N + tn - 1) // tn

    def const_spec(arr):
        # whole array as one block, same block every grid step -> resident
        # (NOTE: could also be single-buffered via pipeline_mode=pl.Buffered(1)
        #  to save ~0.6 MiB VMEM; not needed at these tile sizes.)
        return pl.BlockSpec(arr.shape, lambda i: (0, 0))

    flops = 2 * N * (IN_DIM * HID + HID * HID + HID * 1)
    bytes_accessed = (
        x.size * x.dtype.itemsize                 # dominant: x read
        + N * 4                                   # (N, 1) f32 output
        + 4 * (params["w1"].size + w2f.size + w3f.size + 3 * HID + 1)
    )

    out = pl.pallas_call(
        _mlp_kernel,
        out_shape=jax.ShapeDtypeStruct((N, 1), jnp.float32),
        grid=(grid_n,),
        in_specs=[
            pl.BlockSpec((tn, IN_DIM), lambda i: (i, 0)),   # x: pipelined tiles
            const_spec(params["w1"]),
            const_spec(params["b1"]),
            const_spec(w2f),
            const_spec(b2f),
            const_spec(w3f),
            const_spec(b3f),
        ],
        out_specs=pl.BlockSpec((tn, 1), lambda i: (i, 0)),
        compiler_params=pltpu.CompilerParams(
            dimension_semantics=("parallel",),
            vmem_limit_bytes=48 * 1024 * 1024,
        ),
        cost_estimate=pl.CostEstimate(
            flops=flops, transcendentals=0, bytes_accessed=bytes_accessed),
    )(x, params["w1"], params["b1"], w2f, b2f, w3f, b3f)

    return out


def init_params(key):
    """Deterministic parameter init mirroring the PyTorch module's shapes."""
    ks = jax.random.split(key, 6)

    def linear_init(kw, kb, fan_in, fan_out):
        bound = 1.0 / jnp.sqrt(fan_in)
        w = jax.random.uniform(kw, (fan_in, fan_out), jnp.float32, -bound, bound)
        b = jax.random.uniform(kb, (1, fan_out), jnp.float32, -bound, bound)
        return w, b

    w1, b1 = linear_init(ks[0], ks[1], IN_DIM, HID)
    w2, b2 = linear_init(ks[2], ks[3], HID, HID)
    w3, b3 = linear_init(ks[4], ks[5], HID, 1)

    ones64 = jnp.ones((1, HID), jnp.float32)
    zeros64 = jnp.zeros((1, HID), jnp.float32)

    return {
        "w1": w1, "b1": b1,
        "bn1_gamma": ones64, "bn1_beta": zeros64,
        "bn1_mean": zeros64, "bn1_var": ones64,
        "w2": w2, "b2": b2,
        "bn2_gamma": ones64, "bn2_beta": zeros64,
        "bn2_mean": zeros64, "bn2_var": ones64,
        "w3": w3, "b3": b3,
    }


def _reference_forward(x, p):
    """Unfolded eval-mode reference (matches PyTorch eval forward)."""
    h = jnp.maximum(x @ p["w1"] + p["b1"], 0.0)
    h = (h - p["bn1_mean"]) * (p["bn1_gamma"] / jnp.sqrt(p["bn1_var"] + EPS)) + p["bn1_beta"]
    h = jnp.maximum(h @ p["w2"] + p["b2"], 0.0)
    h = (h - p["bn2_mean"]) * (p["bn2_gamma"] / jnp.sqrt(p["bn2_var"] + EPS)) + p["bn2_beta"]
    return h @ p["w3"] + p["b3"]


if __name__ == "__main__":
    key = jax.random.PRNGKey(0)
    kx, kx2, kp, kbn = jax.random.split(key, 4)
    params = init_params(kp)

    # 1) exact-tile batch (fresh PyTorch-default BN stats)
    x1 = jax.random.normal(kx, (8, IN_DIM), jnp.float32)
    out1 = jax.block_until_ready(binary_classification_forward(x1, params))
    ref1 = _reference_forward(x1, params)
    assert out1.shape == (8, 1)
    assert jnp.allclose(out1, ref1, atol=1e-4, rtol=1e-4), "mismatch (N=8)"

    # 2) non-multiple batch: exercises the partial last tile (no jnp.pad copy)
    x2 = jax.random.normal(kx2, (100, IN_DIM), jnp.float32)
    out2 = jax.block_until_ready(binary_classification_forward(x2, params))
    ref2 = _reference_forward(x2, params)
    assert out2.shape == (100, 1)
    assert jnp.allclose(out2, ref2, atol=1e-4, rtol=1e-4), "mismatch (N=100)"

    # 3) non-trivial BatchNorm running stats: validates the BN->Linear fold
    kb = jax.random.split(kbn, 8)
    params_bn = dict(params)
    params_bn.update({
        "bn1_gamma": jax.random.uniform(kb[0], (1, HID), jnp.float32, 0.5, 1.5),
        "bn1_beta": jax.random.normal(kb[1], (1, HID), jnp.float32) * 0.1,
        "bn1_mean": jax.random.normal(kb[2], (1, HID), jnp.float32) * 0.1,
        "bn1_var": jax.random.uniform(kb[3], (1, HID), jnp.float32, 0.5, 1.5),
        "bn2_gamma": jax.random.uniform(kb[4], (1, HID), jnp.float32, 0.5, 1.5),
        "bn2_beta": jax.random.normal(kb[5], (1, HID), jnp.float32) * 0.1,
        "bn2_mean": jax.random.normal(kb[6], (1, HID), jnp.float32) * 0.1,
        "bn2_var": jax.random.uniform(kb[7], (1, HID), jnp.float32, 0.5, 1.5),
    })
    out3 = jax.block_until_ready(binary_classification_forward(x2, params_bn))
    ref3 = _reference_forward(x2, params_bn)
    assert jnp.allclose(out3, ref3, atol=1e-4, rtol=1e-4), "mismatch (BN fold)"

    print("KERNEL_OK")
</pallas_src>

<mosaic_0001>
module attributes {stable_mosaic.version = 11 : i64} {
  func.func @_mlp_kernel(%arg0: i32, %arg1: memref<8x1152xf32, #tpu.memory_space<vmem>>, %arg2: memref<1152x64xf32, #tpu.memory_space<vmem>>, %arg3: memref<1x64xf32, #tpu.memory_space<vmem>>, %arg4: memref<64x64xf32, #tpu.memory_space<vmem>>, %arg5: memref<1x64xf32, #tpu.memory_space<vmem>>, %arg6: memref<64x1xf32, #tpu.memory_space<vmem>>, %arg7: memref<1x1xf32, #tpu.memory_space<vmem>>, %arg8: memref<8x1xf32, #tpu.memory_space<vmem>>) attributes {dimension_semantics = [#tpu.dimension_semantics<parallel>], iteration_bounds = array<i64: 1>, scalar_prefetch = 0 : i64, scratch_operands = 0 : i64, tpu.core_type = #tpu.core_type<tc>, window_params = [{transform_indices = @transform_0, window_bounds = array<i64: 8, 1152>}, {pipeline_mode = #tpu.pipeline_mode<synchronous>, transform_indices = @transform_1, window_bounds = array<i64: 1152, 64>}, {pipeline_mode = #tpu.pipeline_mode<synchronous>, transform_indices = @transform_2, window_bounds = array<i64: 1, 64>}, {pipeline_mode = #tpu.pipeline_mode<synchronous>, transform_indices = @transform_3, window_bounds = array<i64: 64, 64>}, {pipeline_mode = #tpu.pipeline_mode<synchronous>, transform_indices = @transform_4, window_bounds = array<i64: 1, 64>}, {pipeline_mode = #tpu.pipeline_mode<synchronous>, transform_indices = @transform_5, window_bounds = array<i64: 64, 1>}, {pipeline_mode = #tpu.pipeline_mode<synchronous>, transform_indices = @transform_6, window_bounds = array<i64: 1, 1>}, {transform_indices = @transform_7, window_bounds = array<i64: 8, 1>}]} {
    %c0 = arith.constant 0 : index
    %c0_0 = arith.constant 0 : index
    %0 = vector.load %arg1[%c0, %c0_0] : memref<8x1152xf32, #tpu.memory_space<vmem>>, vector<8x1152xf32>
    %c0_1 = arith.constant 0 : index
    %c0_2 = arith.constant 0 : index
    %1 = vector.load %arg2[%c0_1, %c0_2] : memref<1152x64xf32, #tpu.memory_space<vmem>>, vector<1152x64xf32>
    %cst = arith.constant dense<0.000000e+00> : vector<8x64xf32>
    %2 = tpu.matmul %0, %1, %cst {dimension_numbers = #tpu.dot_dimension_numbers<[1], [0], [0], [1], [0, 0, 1, 1], [], []>} : vector<8x1152xf32>, vector<1152x64xf32>, vector<8x64xf32> -> vector<8x64xf32>
    %c0_3 = arith.constant 0 : index
    %c0_4 = arith.constant 0 : index
    %3 = vector.load %arg3[%c0_3, %c0_4] : memref<1x64xf32, #tpu.memory_space<vmem>>, vector<1x64xf32>
    %4 = vector.broadcast %3 : vector<1x64xf32> to vector<8x64xf32>
    %5 = arith.addf %2, %4 : vector<8x64xf32>
    %cst_5 = arith.constant 0.000000e+00 : f32
    %6 = vector.broadcast %cst_5 : f32 to vector<8x64xf32>
    %7 = arith.maximumf %5, %6 : vector<8x64xf32>
    %c0_6 = arith.constant 0 : index
    %c0_7 = arith.constant 0 : index
    %8 = vector.load %arg4[%c0_6, %c0_7] : memref<64x64xf32, #tpu.memory_space<vmem>>, vector<64x64xf32>
    %cst_8 = arith.constant dense<0.000000e+00> : vector<8x64xf32>
    %9 = tpu.matmul %7, %8, %cst_8 {dimension_numbers = #tpu.dot_dimension_numbers<[1], [0], [0], [1], [0, 0, 1, 1], [], []>} : vector<8x64xf32>, vector<64x64xf32>, vector<8x64xf32> -> vector<8x64xf32>
    %c0_9 = arith.constant 0 : index
    %c0_10 = arith.constant 0 : index
    %10 = vector.load %arg5[%c0_9, %c0_10] : memref<1x64xf32, #tpu.memory_space<vmem>>, vector<1x64xf32>
    %11 = vector.broadcast %10 : vector<1x64xf32> to vector<8x64xf32>
    %12 = arith.addf %9, %11 : vector<8x64xf32>
    %cst_11 = arith.constant 0.000000e+00 : f32
    %13 = vector.broadcast %cst_11 : f32 to vector<8x64xf32>
    %14 = arith.maximumf %12, %13 : vector<8x64xf32>
    %c0_12 = arith.constant 0 : index
    %c0_13 = arith.constant 0 : index
    %15 = vector.load %arg6[%c0_12, %c0_13] : memref<64x1xf32, #tpu.memory_space<vmem>>, vector<64x1xf32>
    %cst_14 = arith.constant dense<0.000000e+00> : vector<8x1xf32>
    %16 = tpu.matmul %14, %15, %cst_14 {dimension_numbers = #tpu.dot_dimension_numbers<[1], [0], [0], [1], [0, 0, 1, 1], [], []>} : vector<8x64xf32>, vector<64x1xf32>, vector<8x1xf32> -> vector<8x1xf32>
    %c0_15 = arith.constant 0 : index
    %c0_16 = arith.constant 0 : index
    %17 = vector.load %arg7[%c0_15, %c0_16] : memref<1x1xf32, #tpu.memory_space<vmem>>, vector<1x1xf32>
    %18 = vector.broadcast %17 : vector<1x1xf32> to vector<8x1xf32>
    %19 = arith.addf %16, %18 : vector<8x1xf32>
    %c0_17 = arith.constant 0 : index
    %c0_18 = arith.constant 0 : index
    %20 = vector.load %arg8[%c0_17, %c0_18] : memref<8x1xf32, #tpu.memory_space<vmem>>, vector<8x1xf32>
    tpu.vector_store %arg8[%c0_17, %c0_18], %19 {strides = array<i32>} : memref<8x1xf32, #tpu.memory_space<vmem>>, vector<8x1xf32>,
    return
  }
  func.func @transform_0(%arg0: i32) -> (i32, i32) {
    %c0_i32 = arith.constant 0 : i32
    %c0_i32_0 = arith.constant 0 : i32
    return %arg0, %c0_i32 : i32, i32
  }
  func.func @transform_1(%arg0: i32) -> (i32, i32) {
    %c0_i32 = arith.constant 0 : i32
    %c0_i32_0 = arith.constant 0 : i32
    %c0_i32_1 = arith.constant 0 : i32
    return %c0_i32, %c0_i32_0 : i32, i32
  }
  func.func @transform_2(%arg0: i32) -> (i32, i32) {
    %c0_i32 = arith.constant 0 : i32
    %c0_i32_0 = arith.constant 0 : i32
    %c0_i32_1 = arith.constant 0 : i32
    return %c0_i32, %c0_i32_0 : i32, i32
  }
  func.func @transform_3(%arg0: i32) -> (i32, i32) {
    %c0_i32 = arith.constant 0 : i32
    %c0_i32_0 = arith.constant 0 : i32
    %c0_i32_1 = arith.constant 0 : i32
    return %c0_i32, %c0_i32_0 : i32, i32
  }
  func.func @transform_4(%arg0: i32) -> (i32, i32) {
    %c0_i32 = arith.constant 0 : i32
    %c0_i32_0 = arith.constant 0 : i32
    %c0_i32_1 = arith.constant 0 : i32
    return %c0_i32, %c0_i32_0 : i32, i32
  }
  func.func @transform_5(%arg0: i32) -> (i32, i32) {
    %c0_i32 = arith.constant 0 : i32
    %c0_i32_0 = arith.constant 0 : i32
    %c0_i32_1 = arith.constant 0 : i32
    return %c0_i32, %c0_i32_0 : i32, i32
  }
  func.func @transform_6(%arg0: i32) -> (i32, i32) {
    %c0_i32 = arith.constant 0 : i32
    %c0_i32_0 = arith.constant 0 : i32
    %c0_i32_1 = arith.constant 0 : i32
    return %c0_i32, %c0_i32_0 : i32, i32
  }
  func.func @transform_7(%arg0: i32) -> (i32, i32) {
    %c0_i32 = arith.constant 0 : i32
    %c0_i32_0 = arith.constant 0 : i32
    return %arg0, %c0_i32 : i32, i32
  }
}

</mosaic_0001>

<llo_original>
// kernel: tpu_custom_call.1
$region0: #{tpu_custom_call.1}
  #allocation0 [shape = 'u32[]', space=smem, size = 0x4, offset = 0x4, fixed_abs, tag = 'smem constant byte address 0x4 - core index']
  #allocation1 [shape = 'u32[144,128]{1,0:T(1,128)}', space=vmem, size = 0x12000, scoped, tag = 'internal scratch']
  #allocation2 [shape = 'f32[1,1]{1,0:T(1,128)S(1)}', space=vmem, size = 0x200, scoped, tag = 'scoped memory for tpu_custom_call.1']
  %s0 = inlined_call_operand.vmem [shape: f32[8,1152], index: 0, kind: input, shape index: {}]
  %s1 = inlined_call_operand.vmem [shape: f32[1152,64], index: 1, kind: input, shape index: {}]
  %s2 = inlined_call_operand.vmem [shape: f32[1,64], index: 2, kind: input, shape index: {}]
  %s3 = inlined_call_operand.vmem [shape: f32[64,64], index: 3, kind: input, shape index: {}]
  %s4 = inlined_call_operand.vmem [shape: f32[1,64], index: 4, kind: input, shape index: {}]
  %s5 = inlined_call_operand.vmem [shape: f32[64,1], index: 5, kind: input, shape index: {}]
  %s6 = inlined_call_operand.<no memory space> [shape: f32[1,1], index: 6, kind: input, shape index: {}]
  %s7 = inlined_call_operand.vmem [shape: f32[8,1], index: 7, kind: output, shape index: {}]
  %s8 = sld [smem:[#allocation0]]
  $region38: #{tpu_custom_call.1} parent=0
    _
  %s10 = ssub.s32 1, %s8
  %s11 = scalar_select 0, %s10, %s8
  %v12 = vstv %s6
  %13 = vst [vmem:[#allocation2] sm:$0x1] %v12
  // Predicated region
  $region2: #{tpu_custom_call.1} parent=0 // pred_check
    _
  $region3: #{tpu_custom_call.1} parent=0 // pred_check_branch
    %15 = sbr.rel (0) target = $region5
  $region4: #{tpu_custom_call.1} parent=0 // pred_region
    _
  $region5: #{tpu_custom_call.1} parent=0 // pred_fallthru
    _
  // Predicated region
  $region6: #{tpu_custom_call.1} parent=0 // pred_check
    _
  $region7: #{tpu_custom_call.1} parent=0 // pred_check_branch
    %17 = sbr.rel (0) target = $region9
  $region8: #{tpu_custom_call.1} parent=0 // pred_region
    _
  $region9: #{tpu_custom_call.1} parent=0 // pred_fallthru
    _
  // Predicated region
  $region10: #{tpu_custom_call.1} parent=0 // pred_check
    _
  $region11: #{tpu_custom_call.1} parent=0 // pred_check_branch
    %19 = sbr.rel (0) target = $region13
  $region12: #{tpu_custom_call.1} parent=0 // pred_region
    _
  $region13: #{tpu_custom_call.1} parent=0 // pred_fallthru
    _
  // Predicated region
  $region14: #{tpu_custom_call.1} parent=0 // pred_check
    _
  $region15: #{tpu_custom_call.1} parent=0 // pred_check_branch
    %21 = sbr.rel (0) target = $region17
  $region16: #{tpu_custom_call.1} parent=0 // pred_region
    _
  $region17: #{tpu_custom_call.1} parent=0 // pred_fallthru
    _
  // Predicated region
  $region18: #{tpu_custom_call.1} parent=0 // pred_check
    _
  $region19: #{tpu_custom_call.1} parent=0 // pred_check_branch
    %23 = sbr.rel (0) target = $region21
  $region20: #{tpu_custom_call.1} parent=0 // pred_region
    _
  $region21: #{tpu_custom_call.1} parent=0 // pred_fallthru
    _
  // Predicated region
  $region22: #{tpu_custom_call.1} parent=0 // pred_check
    _
  $region23: #{tpu_custom_call.1} parent=0 // pred_check_branch
    %25 = sbr.rel (0) target = $region25
  $region24: #{tpu_custom_call.1} parent=0 // pred_region
    _
  $region25: #{tpu_custom_call.1} parent=0 // pred_fallthru
    _
  // Predicated region
  $region26: #{tpu_custom_call.1} parent=0 // pred_check
    _
  $region27: #{tpu_custom_call.1} parent=0 // pred_check_branch
    %27 = sbr.rel (0) target = $region29
  $region28: #{tpu_custom_call.1} parent=0 // pred_region
    _
  $region29: #{tpu_custom_call.1} parent=0 // pred_fallthru
    _
  %v28 = vld [vmem:[%s0] sm:$0xff]
  %v29 = vld [vmem:[%s0 + $0x8] sm:$0xff]
  %v30 = vld [vmem:[%s0 + $0x10] sm:$0xff]
  %v31 = vld [vmem:[%s0 + $0x18] sm:$0xff]
  %v32 = vld [vmem:[%s0 + $0x20] sm:$0xff]
  %v33 = vld [vmem:[%s0 + $0x28] sm:$0xff]
  %v34 = vld [vmem:[%s0 + $0x30] sm:$0xff]
  %v35 = vld [vmem:[%s0 + $0x38] sm:$0xff]
  %v36 = vld [vmem:[%s0 + $0x40] sm:$0xff]
  %v37 = vld [vmem:[%s1] sm:$0xff]
  %v38 = vld [vmem:[%s1 + $0x8] sm:$0xff]
  %v39 = vld [vmem:[%s1 + $0x10] sm:$0xff]
  %v40 = vld [vmem:[%s1 + $0x18] sm:$0xff]
  %v41 = vld [vmem:[%s1 + $0x20] sm:$0xff]
  %v42 = vld [vmem:[%s1 + $0x28] sm:$0xff]
  %v43 = vld [vmem:[%s1 + $0x30] sm:$0xff]
  %v44 = vld [vmem:[%s1 + $0x38] sm:$0xff]
  %v45 = vld [vmem:[%s1 + $0x40] sm:$0xff]
  %v46 = vld [vmem:[%s1 + $0x48] sm:$0xff]
  %v47 = vld [vmem:[%s1 + $0x50] sm:$0xff]
  %v48 = vld [vmem:[%s1 + $0x58] sm:$0xff]
  %v49 = vld [vmem:[%s1 + $0x60] sm:$0xff]
  %v50 = vld [vmem:[%s1 + $0x68] sm:$0xff]
  %v51 = vld [vmem:[%s1 + $0x70] sm:$0xff]
  %v52 = vld [vmem:[%s1 + $0x78] sm:$0xff]
  %v53 = vld [vmem:[%s1 + $0x80] sm:$0xff]
  %v54 = vld [vmem:[%s1 + $0x88] sm:$0xff]
  %v55 = vld [vmem:[%s1 + $0x90] sm:$0xff]
  %v56 = vld [vmem:[%s1 + $0x98] sm:$0xff]
  %v57 = vld [vmem:[%s1 + $0xa0] sm:$0xff]
  %v58 = vld [vmem:[%s1 + $0xa8] sm:$0xff]
  %v59 = vld [vmem:[%s1 + $0xb0] sm:$0xff]
  %v60 = vld [vmem:[%s1 + $0xb8] sm:$0xff]
  %v61 = vld [vmem:[%s1 + $0xc0] sm:$0xff]
  %v62 = vld [vmem:[%s1 + $0xc8] sm:$0xff]
  %v63 = vld [vmem:[%s1 + $0xd0] sm:$0xff]
  %v64 = vld [vmem:[%s1 + $0xd8] sm:$0xff]
  %v65 = vld [vmem:[%s1 + $0xe0] sm:$0xff]
  %v66 = vld [vmem:[%s1 + $0xe8] sm:$0xff]
  %v67 = vld [vmem:[%s1 + $0xf0] sm:$0xff]
  %v68 = vld [vmem:[%s1 + $0xf8] sm:$0xff]
  %v69 = vld [vmem:[%s1 + $0x100] sm:$0xff]
  %v70 = vld [vmem:[%s1 + $0x108] sm:$0xff]
  %v71 = vld [vmem:[%s1 + $0x110] sm:$0xff]
  %v72 = vld [vmem:[%s1 + $0x118] sm:$0xff]
  %v73 = vld [vmem:[%s1 + $0x120] sm:$0xff]
  %v74 = vld [vmem:[%s1 + $0x128] sm:$0xff]
  %v75 = vld [vmem:[%s1 + $0x130] sm:$0xff]
  %v76 = vld [vmem:[%s1 + $0x138] sm:$0xff]
  %v77 = vld [vmem:[%s1 + $0x140] sm:$0xff]
  %v78 = vld [vmem:[%s1 + $0x148] sm:$0xff]
  %v79 = vld [vmem:[%s1 + $0x150] sm:$0xff]
  %v80 = vld [vmem:[%s1 + $0x158] sm:$0xff]
  %v81 = vld [vmem:[%s1 + $0x160] sm:$0xff]
  %v82 = vld [vmem:[%s1 + $0x168] sm:$0xff]
  %v83 = vld [vmem:[%s1 + $0x170] sm:$0xff]
  %v84 = vld [vmem:[%s1 + $0x178] sm:$0xff]
  %v85 = vld [vmem:[%s1 + $0x180] sm:$0xff]
  %v86 = vld [vmem:[%s1 + $0x188] sm:$0xff]
  %v87 = vld [vmem:[%s1 + $0x190] sm:$0xff]
  %v88 = vld [vmem:[%s1 + $0x198] sm:$0xff]
  %v89 = vld [vmem:[%s1 + $0x1a0] sm:$0xff]
  %v90 = vld [vmem:[%s1 + $0x1a8] sm:$0xff]
  %v91 = vld [vmem:[%s1 + $0x1b0] sm:$0xff]
  %v92 = vld [vmem:[%s1 + $0x1b8] sm:$0xff]
  %v93 = vld [vmem:[%s1 + $0x1c0] sm:$0xff]
  %v94 = vld [vmem:[%s1 + $0x1c8] sm:$0xff]
  %v95 = vld [vmem:[%s1 + $0x1d0] sm:$0xff]
  %v96 = vld [vmem:[%s1 + $0x1d8] sm:$0xff]
  %v97 = vld [vmem:[%s1 + $0x1e0] sm:$0xff]
  %v98 = vld [vmem:[%s1 + $0x1e8] sm:$0xff]
  %v99 = vld [vmem:[%s1 + $0x1f0] sm:$0xff]
  %v100 = vld [vmem:[%s1 + $0x1f8] sm:$0xff]
  %v101 = vld [vmem:[%s1 + $0x200] sm:$0xff]
  %v102 = vld [vmem:[%s1 + $0x208] sm:$0xff]
  %v103 = vld [vmem:[%s1 + $0x210] sm:$0xff]
  %v104 = vld [vmem:[%s1 + $0x218] sm:$0xff]
  %v105 = vld [vmem:[%s1 + $0x220] sm:$0xff]
  %v106 = vld [vmem:[%s1 + $0x228] sm:$0xff]
  %v107 = vld [vmem:[%s1 + $0x230] sm:$0xff]
  %v108 = vld [vmem:[%s1 + $0x238] sm:$0xff]
  %v109 = vld [vmem:[%s1 + $0x240] sm:$0xff]
  %v110 = vld [vmem:[%s1 + $0x248] sm:$0xff]
  %v111 = vld [vmem:[%s1 + $0x250] sm:$0xff]
  %v112 = vld [vmem:[%s1 + $0x258] sm:$0xff]
  %v113 = vld [vmem:[%s1 + $0x260] sm:$0xff]
  %v114 = vld [vmem:[%s1 + $0x268] sm:$0xff]
  %v115 = vld [vmem:[%s1 + $0x270] sm:$0xff]
  %v116 = vld [vmem:[%s1 + $0x278] sm:$0xff]
  %v117 = vld [vmem:[%s1 + $0x280] sm:$0xff]
  %v118 = vld [vmem:[%s1 + $0x288] sm:$0xff]
  %v119 = vld [vmem:[%s1 + $0x290] sm:$0xff]
  %v120 = vld [vmem:[%s1 + $0x298] sm:$0xff]
  %v121 = vld [vmem:[%s1 + $0x2a0] sm:$0xff]
  %v122 = vld [vmem:[%s1 + $0x2a8] sm:$0xff]
  %v123 = vld [vmem:[%s1 + $0x2b0] sm:$0xff]
  %v124 = vld [vmem:[%s1 + $0x2b8] sm:$0xff]
  %v125 = vld [vmem:[%s1 + $0x2c0] sm:$0xff]
  %v126 = vld [vmem:[%s1 + $0x2c8] sm:$0xff]
  %v127 = vld [vmem:[%s1 + $0x2d0] sm:$0xff]
  %v128 = vld [vmem:[%s1 + $0x2d8] sm:$0xff]
  %v129 = vld [vmem:[%s1 + $0x2e0] sm:$0xff]
  %v130 = vld [vmem:[%s1 + $0x2e8] sm:$0xff]
  %v131 = vld [vmem:[%s1 + $0x2f0] sm:$0xff]
  %v132 = vld [vmem:[%s1 + $0x2f8] sm:$0xff]
  %v133 = vld [vmem:[%s1 + $0x300] sm:$0xff]
  %v134 = vld [vmem:[%s1 + $0x308] sm:$0xff]
  %v135 = vld [vmem:[%s1 + $0x310] sm:$0xff]
  %v136 = vld [vmem:[%s1 + $0x318] sm:$0xff]
  %v137 = vld [vmem:[%s1 + $0x320] sm:$0xff]
  %v138 = vld [vmem:[%s1 + $0x328] sm:$0xff]
  %v139 = vld [vmem:[%s1 + $0x330] sm:$0xff]
  %v140 = vld [vmem:[%s1 + $0x338] sm:$0xff]
  %v141 = vld [vmem:[%s1 + $0x340] sm:$0xff]
  %v142 = vld [vmem:[%s1 + $0x348] sm:$0xff]
  %v143 = vld [vmem:[%s1 + $0x350] sm:$0xff]
  %v144 = vld [vmem:[%s1 + $0x358] sm:$0xff]
  %v145 = vld [vmem:[%s1 + $0x360] sm:$0xff]
  %v146 = vld [vmem:[%s1 + $0x368] sm:$0xff]
  %v147 = vld [vmem:[%s1 + $0x370] sm:$0xff]
  %v148 = vld [vmem:[%s1 + $0x378] sm:$0xff]
  %v149 = vld [vmem:[%s1 + $0x380] sm:$0xff]
  %v150 = vld [vmem:[%s1 + $0x388] sm:$0xff]
  %v151 = vld [vmem:[%s1 + $0x390] sm:$0xff]
  %v152 = vld [vmem:[%s1 + $0x398] sm:$0xff]
  %v153 = vld [vmem:[%s1 + $0x3a0] sm:$0xff]
  %v154 = vld [vmem:[%s1 + $0x3a8] sm:$0xff]
  %v155 = vld [vmem:[%s1 + $0x3b0] sm:$0xff]
  %v156 = vld [vmem:[%s1 + $0x3b8] sm:$0xff]
  %v157 = vld [vmem:[%s1 + $0x3c0] sm:$0xff]
  %v158 = vld [vmem:[%s1 + $0x3c8] sm:$0xff]
  %v159 = vld [vmem:[%s1 + $0x3d0] sm:$0xff]
  %v160 = vld [vmem:[%s1 + $0x3d8] sm:$0xff]
  %v161 = vld [vmem:[%s1 + $0x3e0] sm:$0xff]
  %v162 = vld [vmem:[%s1 + $0x3e8] sm:$0xff]
  %v163 = vld [vmem:[%s1 + $0x3f0] sm:$0xff]
  %v164 = vld [vmem:[%s1 + $0x3f8] sm:$0xff]
  %v165 = vld [vmem:[%s1 + $0x400] sm:$0xff]
  %v166 = vld [vmem:[%s1 + $0x408] sm:$0xff]
  %v167 = vld [vmem:[%s1 + $0x410] sm:$0xff]
  %v168 = vld [vmem:[%s1 + $0x418] sm:$0xff]
  %v169 = vld [vmem:[%s1 + $0x420] sm:$0xff]
  %v170 = vld [vmem:[%s1 + $0x428] sm:$0xff]
  %v171 = vld [vmem:[%s1 + $0x430] sm:$0xff]
  %v172 = vld [vmem:[%s1 + $0x438] sm:$0xff]
  %v173 = vld [vmem:[%s1 + $0x440] sm:$0xff]
  %v174 = vld [vmem:[%s1 + $0x448] sm:$0xff]
  %v175 = vld [vmem:[%s1 + $0x450] sm:$0xff]
  %v176 = vld [vmem:[%s1 + $0x458] sm:$0xff]
  %v177 = vld [vmem:[%s1 + $0x460] sm:$0xff]
  %v178 = vld [vmem:[%s1 + $0x468] sm:$0xff]
  %v179 = vld [vmem:[%s1 + $0x470] sm:$0xff]
  %v180 = vld [vmem:[%s1 + $0x478] sm:$0xff]
  %v181 = vld [vmem:[%s2] sm:$0x1]
  %v183 = vlaneseq
  %v184 = vshrl.u32 %v183, 7
  %v185 = vsub.s32 0, %v184
  %v186 = vrot.slane %v181, %v185
  %188 = vmatprep.subr.mxu0 0.0
  %189 = vmatpush1.msra.mxu0 %v52
  %190 = vmatprep.subr.mxu0 0.0
  %191 = vmatpush1.msra.mxu0 %v51
  %192 = vmatprep.subr.mxu0 0.0
  %193 = vmatpush1.msra.mxu0 %v50
  %194 = vmatprep.subr.mxu0 0.0
  %195 = vmatpush1.msra.mxu0 %v49
  %196 = vmatprep.subr.mxu0 0.0
  %197 = vmatpush1.msra.mxu0 %v48
  %198 = vmatprep.subr.mxu0 0.0
  %199 = vmatpush1.msra.mxu0 %v47
  %200 = vmatprep.subr.mxu0 0.0
  %201 = vmatpush1.msra.mxu0 %v46
  %202 = vmatprep.subr.mxu0 0.0
  %203 = vmatpush1.msra.mxu0 %v45
  %204 = vmatprep.subr.mxu0 0.0
  %205 = vmatpush1.msra.mxu0 %v44
  %206 = vmatprep.subr.mxu0 0.0
  %207 = vmatpush1.msra.mxu0 %v43
  %208 = vmatprep.subr.mxu0 0.0
  %209 = vmatpush1.msra.mxu0 %v42
  %210 = vmatprep.subr.mxu0 0.0
  %211 = vmatpush1.msra.mxu0 %v41
  %212 = vmatprep.subr.mxu0 0.0
  %213 = vmatpush1.msra.mxu0 %v40
  %214 = vmatprep.subr.mxu0 0.0
  %215 = vmatpush1.msra.mxu0 %v39
  %216 = vmatprep.subr.mxu0 0.0
  %217 = vmatpush1.msra.mxu0 %v38
  %218 = vmatprep.subr.mxu0 0.0
  %219 = vmatpush1.msra.mxu0 %v37
  %220 = vmatprep.subr.mxu0 0.0
  %221 = vmatpush2.msra.mxu0 %v68
  %222 = vmatprep.subr.mxu0 0.0
  %223 = vmatpush2.msra.mxu0 %v67
  %224 = vmatprep.subr.mxu0 0.0
  %225 = vmatpush2.msra.mxu0 %v66
  %226 = vmatprep.subr.mxu0 0.0
  %227 = vmatpush2.msra.mxu0 %v65
  %228 = vmatprep.subr.mxu0 0.0
  %229 = vmatpush2.msra.mxu0 %v64
  %230 = vmatprep.subr.mxu0 0.0
  %231 = vmatpush2.msra.mxu0 %v63
  %232 = vmatprep.subr.mxu0 0.0
  %233 = vmatpush2.msra.mxu0 %v62
  %234 = vmatprep.subr.mxu0 0.0
  %235 = vmatpush2.msra.mxu0 %v61
  %236 = vmatprep.subr.mxu0 0.0
  %237 = vmatpush2.msra.mxu0 %v60
  %238 = vmatprep.subr.mxu0 0.0
  %239 = vmatpush2.msra.mxu0 %v59
  %240 = vmatprep.subr.mxu0 0.0
  %241 = vmatpush2.msra.mxu0 %v58
  %242 = vmatprep.subr.mxu0 0.0
  %243 = vmatpush2.msra.mxu0 %v57
  %244 = vmatprep.subr.mxu0 0.0
  %245 = vmatpush2.msra.mxu0 %v56
  %246 = vmatprep.subr.mxu0 0.0
  %247 = vmatpush2.msra.mxu0 %v55
  %248 = vmatprep.subr.mxu0 0.0
  %249 = vmatpush2.msra.mxu0 %v54
  %250 = vmatprep.subr.mxu0 0.0
  %251 = vmatpush2.msra.mxu0 %v53
  %252 = vmatprep.mubr.f32.mxu0 %v29
  %253 = vmatmul.mubr.f32.gmra.mxu0 %v28
  %v254 = vpop.f32.mrf.mxu0
  %v255 = vadd.f32 %v186, %v254
  %v256 = vpop.f32.mrf.mxu0
  %257 = vdwg.mxu0
  %258 = vmatprep.subr.mxu0 0.0
  %259 = vmatpush1.msra.mxu0 %v84
  %260 = vmatprep.subr.mxu0 0.0
  %261 = vmatpush1.msra.mxu0 %v83
  %262 = vmatprep.subr.mxu0 0.0
  %263 = vmatpush1.msra.mxu0 %v82
  %264 = vmatprep.subr.mxu0 0.0
  %265 = vmatpush1.msra.mxu0 %v81
  %266 = vmatprep.subr.mxu0 0.0
  %267 = vmatpush1.msra.mxu0 %v80
  %268 = vmatprep.subr.mxu0 0.0
  %269 = vmatpush1.msra.mxu0 %v79
  %270 = vmatprep.subr.mxu0 0.0
  %271 = vmatpush1.msra.mxu0 %v78
  %272 = vmatprep.subr.mxu0 0.0
  %273 = vmatpush1.msra.mxu0 %v77
  %274 = vmatprep.subr.mxu0 0.0
  %275 = vmatpush1.msra.mxu0 %v76
  %276 = vmatprep.subr.mxu0 0.0
  %277 = vmatpush1.msra.mxu0 %v75
  %278 = vmatprep.subr.mxu0 0.0
  %279 = vmatpush1.msra.mxu0 %v74
  %280 = vmatprep.subr.mxu0 0.0
  %281 = vmatpush1.msra.mxu0 %v73
  %282 = vmatprep.subr.mxu0 0.0
  %283 = vmatpush1.msra.mxu0 %v72
  %284 = vmatprep.subr.mxu0 0.0
  %285 = vmatpush1.msra.mxu0 %v71
  %286 = vmatprep.subr.mxu0 0.0
  %287 = vmatpush1.msra.mxu0 %v70
  %288 = vmatprep.subr.mxu0 0.0
  %289 = vmatpush1.msra.mxu0 %v69
  %290 = vmatprep.subr.mxu0 0.0
  %291 = vmatpush2.msra.mxu0 %v100
  %292 = vmatprep.subr.mxu0 0.0
  %293 = vmatpush2.msra.mxu0 %v99
  %294 = vmatprep.subr.mxu0 0.0
  %295 = vmatpush2.msra.mxu0 %v98
  %296 = vmatprep.subr.mxu0 0.0
  %297 = vmatpush2.msra.mxu0 %v97
  %298 = vmatprep.subr.mxu0 0.0
  %299 = vmatpush2.msra.mxu0 %v96
  %300 = vmatprep.subr.mxu0 0.0
  %301 = vmatpush2.msra.mxu0 %v95
  %302 = vmatprep.subr.mxu0 0.0
  %303 = vmatpush2.msra.mxu0 %v94
  %304 = vmatprep.subr.mxu0 0.0
  %305 = vmatpush2.msra.mxu0 %v93
  %306 = vmatprep.subr.mxu0 0.0
  %307 = vmatpush2.msra.mxu0 %v92
  %308 = vmatprep.subr.mxu0 0.0
  %309 = vmatpush2.msra.mxu0 %v91
  %310 = vmatprep.subr.mxu0 0.0
  %311 = vmatpush2.msra.mxu0 %v90
  %312 = vmatprep.subr.mxu0 0.0
  %313 = vmatpush2.msra.mxu0 %v89
  %314 = vmatprep.subr.mxu0 0.0
  %315 = vmatpush2.msra.mxu0 %v88
  %316 = vmatprep.subr.mxu0 0.0
  %317 = vmatpush2.msra.mxu0 %v87
  %318 = vmatprep.subr.mxu0 0.0
  %319 = vmatpush2.msra.mxu0 %v86
  %320 = vmatprep.subr.mxu0 0.0
  %321 = vmatpush2.msra.mxu0 %v85
  %322 = vmatprep.mubr.f32.mxu0 %v31
  %323 = vmatmul.mubr.f32.gmra.mxu0 %v30
  %v324 = vpop.f32.mrf.mxu0
  %v325 = vadd.f32 %v255, %v324
  %v326 = vpop.f32.mrf.mxu0
  %327 = vdwg.mxu0
  %328 = vmatprep.subr.mxu0 0.0
  %329 = vmatpush1.msra.mxu0 %v116
  %330 = vmatprep.subr.mxu0 0.0
  %331 = vmatpush1.msra.mxu0 %v115
  %332 = vmatprep.subr.mxu0 0.0
  %333 = vmatpush1.msra.mxu0 %v114
  %334 = vmatprep.subr.mxu0 0.0
  %335 = vmatpush1.msra.mxu0 %v113
  %336 = vmatprep.subr.mxu0 0.0
  %337 = vmatpush1.msra.mxu0 %v112
  %338 = vmatprep.subr.mxu0 0.0
  %339 = vmatpush1.msra.mxu0 %v111
  %340 = vmatprep.subr.mxu0 0.0
  %341 = vmatpush1.msra.mxu0 %v110
  %342 = vmatprep.subr.mxu0 0.0
  %343 = vmatpush1.msra.mxu0 %v109
  %344 = vmatprep.subr.mxu0 0.0
  %345 = vmatpush1.msra.mxu0 %v108
  %346 = vmatprep.subr.mxu0 0.0
  %347 = vmatpush1.msra.mxu0 %v107
  %348 = vmatprep.subr.mxu0 0.0
  %349 = vmatpush1.msra.mxu0 %v106
  %350 = vmatprep.subr.mxu0 0.0
  %351 = vmatpush1.msra.mxu0 %v105
  %352 = vmatprep.subr.mxu0 0.0
  %353 = vmatpush1.msra.mxu0 %v104
  %354 = vmatprep.subr.mxu0 0.0
  %355 = vmatpush1.msra.mxu0 %v103
  %356 = vmatprep.subr.mxu0 0.0
  %357 = vmatpush1.msra.mxu0 %v102
  %358 = vmatprep.subr.mxu0 0.0
  %359 = vmatpush1.msra.mxu0 %v101
  %360 = vmatprep.subr.mxu0 0.0
  %361 = vmatpush2.msra.mxu0 %v132
  %362 = vmatprep.subr.mxu0 0.0
  %363 = vmatpush2.msra.mxu0 %v131
  %364 = vmatprep.subr.mxu0 0.0
  %365 = vmatpush2.msra.mxu0 %v130
  %366 = vmatprep.subr.mxu0 0.0
  %367 = vmatpush2.msra.mxu0 %v129
  %368 = vmatprep.subr.mxu0 0.0
  %369 = vmatpush2.msra.mxu0 %v128
  %370 = vmatprep.subr.mxu0 0.0
  %371 = vmatpush2.msra.mxu0 %v127
  %372 = vmatprep.subr.mxu0 0.0
  %373 = vmatpush2.msra.mxu0 %v126
  %374 = vmatprep.subr.mxu0 0.0
  %375 = vmatpush2.msra.mxu0 %v125
  %376 = vmatprep.subr.mxu0 0.0
  %377 = vmatpush2.msra.mxu0 %v124
  %378 = vmatprep.subr.mxu0 0.0
  %379 = vmatpush2.msra.mxu0 %v123
  %380 = vmatprep.subr.mxu0 0.0
  %381 = vmatpush2.msra.mxu0 %v122
  %382 = vmatprep.subr.mxu0 0.0
  %383 = vmatpush2.msra.mxu0 %v121
  %384 = vmatprep.subr.mxu0 0.0
  %385 = vmatpush2.msra.mxu0 %v120
  %386 = vmatprep.subr.mxu0 0.0
  %387 = vmatpush2.msra.mxu0 %v119
  %388 = vmatprep.subr.mxu0 0.0
  %389 = vmatpush2.msra.mxu0 %v118
  %390 = vmatprep.subr.mxu0 0.0
  %391 = vmatpush2.msra.mxu0 %v117
  %392 = vmatprep.mubr.f32.mxu0 %v33
  %393 = vmatmul.mubr.f32.gmra.mxu0 %v32
  %v394 = vpop.f32.mrf.mxu0
  %v395 = vadd.f32 %v325, %v394
  %v396 = vpop.f32.mrf.mxu0
  %397 = vdwg.mxu0
  %398 = vmatprep.subr.mxu0 0.0
  %399 = vmatpush1.msra.mxu0 %v148
  %400 = vmatprep.subr.mxu0 0.0
  %401 = vmatpush1.msra.mxu0 %v147
  %402 = vmatprep.subr.mxu0 0.0
  %403 = vmatpush1.msra.mxu0 %v146
  %404 = vmatprep.subr.mxu0 0.0
  %405 = vmatpush1.msra.mxu0 %v145
  %406 = vmatprep.subr.mxu0 0.0
  %407 = vmatpush1.msra.mxu0 %v144
  %408 = vmatprep.subr.mxu0 0.0
  %409 = vmatpush1.msra.mxu0 %v143
  %410 = vmatprep.subr.mxu0 0.0
  %411 = vmatpush1.msra.mxu0 %v142
  %412 = vmatprep.subr.mxu0 0.0
  %413 = vmatpush1.msra.mxu0 %v141
  %414 = vmatprep.subr.mxu0 0.0
  %415 = vmatpush1.msra.mxu0 %v140
  %416 = vmatprep.subr.mxu0 0.0
  %417 = vmatpush1.msra.mxu0 %v139
  %418 = vmatprep.subr.mxu0 0.0
  %419 = vmatpush1.msra.mxu0 %v138
  %420 = vmatprep.subr.mxu0 0.0
  %421 = vmatpush1.msra.mxu0 %v137
  %422 = vmatprep.subr.mxu0 0.0
  %423 = vmatpush1.msra.mxu0 %v136
  %424 = vmatprep.subr.mxu0 0.0
  %425 = vmatpush1.msra.mxu0 %v135
  %426 = vmatprep.subr.mxu0 0.0
  %427 = vmatpush1.msra.mxu0 %v134
  %428 = vmatprep.subr.mxu0 0.0
  %429 = vmatpush1.msra.mxu0 %v133
  %430 = vmatprep.subr.mxu0 0.0
  %431 = vmatpush2.msra.mxu0 %v164
  %432 = vmatprep.subr.mxu0 0.0
  %433 = vmatpush2.msra.mxu0 %v163
  %434 = vmatprep.subr.mxu0 0.0
  %435 = vmatpush2.msra.mxu0 %v162
  %436 = vmatprep.subr.mxu0 0.0
  %437 = vmatpush2.msra.mxu0 %v161
  %438 = vmatprep.subr.mxu0 0.0
  %439 = vmatpush2.msra.mxu0 %v160
  %440 = vmatprep.subr.mxu0 0.0
  %441 = vmatpush2.msra.mxu0 %v159
  %442 = vmatprep.subr.mxu0 0.0
  %443 = vmatpush2.msra.mxu0 %v158
  %444 = vmatprep.subr.mxu0 0.0
  %445 = vmatpush2.msra.mxu0 %v157
  %446 = vmatprep.subr.mxu0 0.0
  %447 = vmatpush2.msra.mxu0 %v156
  %448 = vmatprep.subr.mxu0 0.0
  %449 = vmatpush2.msra.mxu0 %v155
  %450 = vmatprep.subr.mxu0 0.0
  %451 = vmatpush2.msra.mxu0 %v154
  %452 = vmatprep.subr.mxu0 0.0
  %453 = vmatpush2.msra.mxu0 %v153
  %454 = vmatprep.subr.mxu0 0.0
  %455 = vmatpush2.msra.mxu0 %v152
  %456 = vmatprep.subr.mxu0 0.0
  %457 = vmatpush2.msra.mxu0 %v151
  %458 = vmatprep.subr.mxu0 0.0
  %459 = vmatpush2.msra.mxu0 %v150
  %460 = vmatprep.subr.mxu0 0.0
  %461 = vmatpush2.msra.mxu0 %v149
  %462 = vmatprep.mubr.f32.mxu0 %v35
  %463 = vmatmul.mubr.f32.gmra.mxu0 %v34
  %v464 = vpop.f32.mrf.mxu0
  %v465 = vadd.f32 %v395, %v464
  %v466 = vpop.f32.mrf.mxu0
  %467 = vdwg.mxu0
  %468 = vmatprep.subr.mxu0 0.0
  %469 = vmatpush1.msra.mxu0 %v180
  %470 = vmatprep.subr.mxu0 0.0
  %471 = vmatpush1.msra.mxu0 %v179
  %472 = vmatprep.subr.mxu0 0.0
  %473 = vmatpush1.msra.mxu0 %v178
  %474 = vmatprep.subr.mxu0 0.0
  %475 = vmatpush1.msra.mxu0 %v177
  %476 = vmatprep.subr.mxu0 0.0
  %477 = vmatpush1.msra.mxu0 %v176
  %478 = vmatprep.subr.mxu0 0.0
  %479 = vmatpush1.msra.mxu0 %v175
  %480 = vmatprep.subr.mxu0 0.0
  %481 = vmatpush1.msra.mxu0 %v174
  %482 = vmatprep.subr.mxu0 0.0
  %483 = vmatpush1.msra.mxu0 %v173
  %484 = vmatprep.subr.mxu0 0.0
  %485 = vmatpush1.msra.mxu0 %v172
  %486 = vmatprep.subr.mxu0 0.0
  %487 = vmatpush1.msra.mxu0 %v171
  %488 = vmatprep.subr.mxu0 0.0
  %489 = vmatpush1.msra.mxu0 %v170
  %490 = vmatprep.subr.mxu0 0.0
  %491 = vmatpush1.msra.mxu0 %v169
  %492 = vmatprep.subr.mxu0 0.0
  %493 = vmatpush1.msra.mxu0 %v168
  %494 = vmatprep.subr.mxu0 0.0
  %495 = vmatpush1.msra.mxu0 %v167
  %496 = vmatprep.subr.mxu0 0.0
  %497 = vmatpush1.msra.mxu0 %v166
  %498 = vmatprep.subr.mxu0 0.0
  %499 = vmatpush1.msra.mxu0 %v165
  %500 = vmatprep.subr.mxu0 0.0
  %501 = vmatpush2.msra.mxu0 0.0
  %502 = vmatprep.subr.mxu0 0.0
  %503 = vmatpush2.msra.mxu0 0.0
  %504 = vmatprep.subr.mxu0 0.0
  %505 = vmatpush2.msra.mxu0 0.0
  %506 = vmatprep.subr.mxu0 0.0
  %507 = vmatpush2.msra.mxu0 0.0
  %508 = vmatprep.subr.mxu0 0.0
  %509 = vmatpush2.msra.mxu0 0.0
  %510 = vmatprep.subr.mxu0 0.0
  %511 = vmatpush2.msra.mxu0 0.0
  %512 = vmatprep.subr.mxu0 0.0
  %513 = vmatpush2.msra.mxu0 0.0
  %514 = vmatprep.subr.mxu0 0.0
  %515 = vmatpush2.msra.mxu0 0.0
  %516 = vmatprep.subr.mxu0 0.0
  %517 = vmatpush2.msra.mxu0 0.0
  %518 = vmatprep.subr.mxu0 0.0
  %519 = vmatpush2.msra.mxu0 0.0
  %520 = vmatprep.subr.mxu0 0.0
  %521 = vmatpush2.msra.mxu0 0.0
  %522 = vmatprep.subr.mxu0 0.0
  %523 = vmatpush2.msra.mxu0 0.0
  %524 = vmatprep.subr.mxu0 0.0
  %525 = vmatpush2.msra.mxu0 0.0
  %526 = vmatprep.subr.mxu0 0.0
  %527 = vmatpush2.msra.mxu0 0.0
  %528 = vmatprep.subr.mxu0 0.0
  %529 = vmatpush2.msra.mxu0 0.0
  %530 = vmatprep.subr.mxu0 0.0
  %531 = vmatpush2.msra.mxu0 0.0
  %532 = vmatprep.mubr.f32.mxu0 0.0
  %533 = vmatmul.mubr.f32.gmra.mxu0 %v36
  %v534 = vpop.f32.mrf.mxu0
  %v535 = vadd.f32 %v465, %v534
  %v536 = vpop.f32.mrf.mxu0
  %537 = vdwg.mxu0
  %v538 = vmax.f32 %v535, 0.0
  %v539 = vld [vmem:[%s3] sm:$0xff]
  %v540 = vld [vmem:[%s3 + $0x8] sm:$0xff]
  %v541 = vld [vmem:[%s3 + $0x10] sm:$0xff]
  %v542 = vld [vmem:[%s3 + $0x18] sm:$0xff]
  %v543 = vld [vmem:[%s3 + $0x20] sm:$0xff]
  %v544 = vld [vmem:[%s3 + $0x28] sm:$0xff]
  %v545 = vld [vmem:[%s3 + $0x30] sm:$0xff]
  %v546 = vld [vmem:[%s3 + $0x38] sm:$0xff]
  %v547 = vld [vmem:[%s4] sm:$0x1]
  %v549 = vlaneseq
  %v550 = vshrl.u32 %v549, 7
  %v551 = vsub.s32 0, %v550
  %v552 = vrot.slane %v547, %v551
  %vm554 = vcmask 523264
  %v556 = vsel %vm554, %v538, 0
  %558 = vmatprep.subr.mxu0 0.0
  %559 = vmatpush1.msra.mxu0 0.0
  %560 = vmatprep.subr.mxu0 0.0
  %561 = vmatpush1.msra.mxu0 0.0
  %562 = vmatprep.subr.mxu0 0.0
  %563 = vmatpush1.msra.mxu0 0.0
  %564 = vmatprep.subr.mxu0 0.0
  %565 = vmatpush1.msra.mxu0 0.0
  %566 = vmatprep.subr.mxu0 0.0
  %567 = vmatpush1.msra.mxu0 0.0
  %568 = vmatprep.subr.mxu0 0.0
  %569 = vmatpush1.msra.mxu0 0.0
  %570 = vmatprep.subr.mxu0 0.0
  %571 = vmatpush1.msra.mxu0 0.0
  %572 = vmatprep.subr.mxu0 0.0
  %573 = vmatpush1.msra.mxu0 0.0
  %574 = vmatprep.subr.mxu0 0.0
  %575 = vmatpush1.msra.mxu0 %v546
  %576 = vmatprep.subr.mxu0 0.0
  %577 = vmatpush1.msra.mxu0 %v545
  %578 = vmatprep.subr.mxu0 0.0
  %579 = vmatpush1.msra.mxu0 %v544
  %580 = vmatprep.subr.mxu0 0.0
  %581 = vmatpush1.msra.mxu0 %v543
  %582 = vmatprep.subr.mxu0 0.0
  %583 = vmatpush1.msra.mxu0 %v542
  %584 = vmatprep.subr.mxu0 0.0
  %585 = vmatpush1.msra.mxu0 %v541
  %586 = vmatprep.subr.mxu0 0.0
  %587 = vmatpush1.msra.mxu0 %v540
  %588 = vmatprep.subr.mxu0 0.0
  %589 = vmatpush1.msra.mxu0 %v539
  %590 = vmatprep.subr.mxu0 0.0
  %591 = vmatpush2.msra.mxu0 0.0
  %592 = vmatprep.subr.mxu0 0.0
  %593 = vmatpush2.msra.mxu0 0.0
  %594 = vmatprep.subr.mxu0 0.0
  %595 = vmatpush2.msra.mxu0 0.0
  %596 = vmatprep.subr.mxu0 0.0
  %597 = vmatpush2.msra.mxu0 0.0
  %598 = vmatprep.subr.mxu0 0.0
  %599 = vmatpush2.msra.mxu0 0.0
  %600 = vmatprep.subr.mxu0 0.0
  %601 = vmatpush2.msra.mxu0 0.0
  %602 = vmatprep.subr.mxu0 0.0
  %603 = vmatpush2.msra.mxu0 0.0
  %604 = vmatprep.subr.mxu0 0.0
  %605 = vmatpush2.msra.mxu0 0.0
  %606 = vmatprep.subr.mxu0 0.0
  %607 = vmatpush2.msra.mxu0 0.0
  %608 = vmatprep.subr.mxu0 0.0
  %609 = vmatpush2.msra.mxu0 0.0
  %610 = vmatprep.subr.mxu0 0.0
  %611 = vmatpush2.msra.mxu0 0.0
  %612 = vmatprep.subr.mxu0 0.0
  %613 = vmatpush2.msra.mxu0 0.0
  %614 = vmatprep.subr.mxu0 0.0
  %615 = vmatpush2.msra.mxu0 0.0
  %616 = vmatprep.subr.mxu0 0.0
  %617 = vmatpush2.msra.mxu0 0.0
  %618 = vmatprep.subr.mxu0 0.0
  %619 = vmatpush2.msra.mxu0 0.0
  %620 = vmatprep.subr.mxu0 0.0
  %621 = vmatpush2.msra.mxu0 0.0
  %622 = vmatprep.mubr.f32.mxu0 0.0
  %623 = vmatmul.mubr.f32.gmra.mxu0 %v556
  %v624 = vpop.f32.mrf.mxu0
  %v625 = vadd.f32 %v552, %v624
  %v626 = vpop.f32.mrf.mxu0
  %627 = vdwg.mxu0
  %v628 = vmax.f32 %v625, 0.0
  %v629 = vld [vmem:[%s5] sm:$0xff]
  %v630 = vld [vmem:[%s5 + $0x8] sm:$0xff]
  %v631 = vld [vmem:[%s5 + $0x10] sm:$0xff]
  %v632 = vld [vmem:[%s5 + $0x18] sm:$0xff]
  %v633 = vld [vmem:[%s5 + $0x20] sm:$0xff]
  %v634 = vld [vmem:[%s5 + $0x28] sm:$0xff]
  %v635 = vld [vmem:[%s5 + $0x30] sm:$0xff]
  %v636 = vld [vmem:[%s5 + $0x38] sm:$0xff]
  %v637 = vld [vmem:[#allocation2] sm:$0x1]
  %v639 = vlaneseq
  %v640 = vshrl.u32 %v639, 7
  %v641 = vsub.s32 0, %v640
  %v642 = vrot.slane %v637, %v641
  %v645 = vsel %vm554, %v628, 0
  %647 = vmatprep.subr.mxu0 0.0
  %648 = vmatpush1.msra.mxu0 0.0
  %649 = vmatprep.subr.mxu0 0.0
  %650 = vmatpush1.msra.mxu0 0.0
  %651 = vmatprep.subr.mxu0 0.0
  %652 = vmatpush1.msra.mxu0 0.0
  %653 = vmatprep.subr.mxu0 0.0
  %654 = vmatpush1.msra.mxu0 0.0
  %655 = vmatprep.subr.mxu0 0.0
  %656 = vmatpush1.msra.mxu0 0.0
  %657 = vmatprep.subr.mxu0 0.0
  %658 = vmatpush1.msra.mxu0 0.0
  %659 = vmatprep.subr.mxu0 0.0
  %660 = vmatpush1.msra.mxu0 0.0
  %661 = vmatprep.subr.mxu0 0.0
  %662 = vmatpush1.msra.mxu0 0.0
  %663 = vmatprep.subr.mxu0 0.0
  %664 = vmatpush1.msra.mxu0 %v636
  %665 = vmatprep.subr.mxu0 0.0
  %666 = vmatpush1.msra.mxu0 %v635
  %667 = vmatprep.subr.mxu0 0.0
  %668 = vmatpush1.msra.mxu0 %v634
  %669 = vmatprep.subr.mxu0 0.0
  %670 = vmatpush1.msra.mxu0 %v633
  %671 = vmatprep.subr.mxu0 0.0
  %672 = vmatpush1.msra.mxu0 %v632
  %673 = vmatprep.subr.mxu0 0.0
  %674 = vmatpush1.msra.mxu0 %v631
  %675 = vmatprep.subr.mxu0 0.0
  %676 = vmatpush1.msra.mxu0 %v630
  %677 = vmatprep.subr.mxu0 0.0
  %678 = vmatpush1.msra.mxu0 %v629
  %679 = vmatprep.subr.mxu0 0.0
  %680 = vmatpush2.msra.mxu0 0.0
  %681 = vmatprep.subr.mxu0 0.0
  %682 = vmatpush2.msra.mxu0 0.0
  %683 = vmatprep.subr.mxu0 0.0
  %684 = vmatpush2.msra.mxu0 0.0
  %685 = vmatprep.subr.mxu0 0.0
  %686 = vmatpush2.msra.mxu0 0.0
  %687 = vmatprep.subr.mxu0 0.0
  %688 = vmatpush2.msra.mxu0 0.0
  %689 = vmatprep.subr.mxu0 0.0
  %690 = vmatpush2.msra.mxu0 0.0
  %691 = vmatprep.subr.mxu0 0.0
  %692 = vmatpush2.msra.mxu0 0.0
  %693 = vmatprep.subr.mxu0 0.0
  %694 = vmatpush2.msra.mxu0 0.0
  %695 = vmatprep.subr.mxu0 0.0
  %696 = vmatpush2.msra.mxu0 0.0
  %697 = vmatprep.subr.mxu0 0.0
  %698 = vmatpush2.msra.mxu0 0.0
  %699 = vmatprep.subr.mxu0 0.0
  %700 = vmatpush2.msra.mxu0 0.0
  %701 = vmatprep.subr.mxu0 0.0
  %702 = vmatpush2.msra.mxu0 0.0
  %703 = vmatprep.subr.mxu0 0.0
  %704 = vmatpush2.msra.mxu0 0.0
  %705 = vmatprep.subr.mxu0 0.0
  %706 = vmatpush2.msra.mxu0 0.0
  %707 = vmatprep.subr.mxu0 0.0
  %708 = vmatpush2.msra.mxu0 0.0
  %709 = vmatprep.subr.mxu0 0.0
  %710 = vmatpush2.msra.mxu0 0.0
  %711 = vmatprep.mubr.f32.mxu0 0.0
  %712 = vmatmul.mubr.f32.gmra.mxu0 %v645
  %v713 = vpop.f32.mrf.mxu0
  %v714 = vadd.f32 %v642, %v713
  %v715 = vpop.f32.mrf.mxu0
  %716 = vdwg.mxu0
  %vm717 = vcmask 7168
  %718 = vst.msk [vmem:[%s7] sm:$0xff] %vm717, %v714
  // Predicated region
  $region30: #{tpu_custom_call.1} parent=0 // pred_check
    _
  $region31: #{tpu_custom_call.1} parent=0 // pred_check_branch
    %720 = sbr.rel (0) target = $region33
  $region32: #{tpu_custom_call.1} parent=0 // pred_region
    _
  $region33: #{tpu_custom_call.1} parent=0 // pred_fallthru
    _
  // Predicated region
  $region34: #{tpu_custom_call.1} parent=0 // pred_check
    _
  $region35: #{tpu_custom_call.1} parent=0 // pred_check_branch
    %722 = sbr.rel (0) target = $region37
  $region36: #{tpu_custom_call.1} parent=0 // pred_region
    _
  $region37: #{tpu_custom_call.1} parent=0 // pred_fallthru
    _

</llo_original>
